<compile_context>
chip_gen: v7x
topology: tpu7x:2x2x1
jax: 0.10.0
libtpu: 0.0.40
codegen_flags: <defaults>
</compile_context>

<pallas_src>
import jax
import jax.numpy as jnp
from jax.experimental import pallas as pl
from jax.experimental.pallas import tpu as pltpu

L = 10   # number of Linear layers in the ModuleList
D = 10   # Linear(10, 10)


def _fused_bmm_sum_kernel(x_ref, w_ref, b_ref, o_ref):
    # x_ref: (B, K_pad)     — all layer inputs concatenated along the feature dim
    # w_ref: (K_pad, Dout)  — all layer weights stacked (already transposed i->o)
    # b_ref: (1, Dout)      — pre-summed bias
    # o_ref: (B, Dout)
    o_ref[...] = (
        jnp.dot(x_ref[...], w_ref[...], preferred_element_type=jnp.float32)
        + b_ref[...]
    )


def bmm_fusion_forward(x_stacked, w_stacked, b_stacked):
    """x_stacked: (L, B, D_in), w_stacked: (L, D_out, D_in), b_stacked: (L, D_out)
    -> (B, D_out) = sum_l (x[l] @ W[l].T + b[l])."""
    Ln, B, Din = x_stacked.shape
    _, Dout, _ = w_stacked.shape
    K = Ln * Din
    K_pad = ((K + 127) // 128) * 128  # align contraction dim to the 128-lane tile

    # Layout plumbing (handled once by XLA outside the kernel):
    #   sum_l x[l] @ W[l].T  ==  concat_l(x[l], axis=feat) @ stack_l(W[l].T, axis=0)
    x_flat = jnp.transpose(x_stacked, (1, 0, 2)).reshape(B, K)         # (B, L*Din)
    w_flat = jnp.transpose(w_stacked, (0, 2, 1)).reshape(K, Dout)      # (L*Din, Dout)
    if K_pad != K:
        x_flat = jnp.pad(x_flat, ((0, 0), (0, K_pad - K)))
        w_flat = jnp.pad(w_flat, ((0, K_pad - K), (0, 0)))
    bias_sum = jnp.sum(b_stacked, axis=0).reshape(1, Dout)             # (1, Dout)

    vmem = pl.BlockSpec(memory_space=pltpu.MemorySpace.VMEM)
    return pl.pallas_call(
        _fused_bmm_sum_kernel,
        out_shape=jax.ShapeDtypeStruct((B, Dout), jnp.float32),
        in_specs=[vmem, vmem, vmem],
        out_specs=vmem,
    )(x_flat, w_flat, bias_sum)


if __name__ == "__main__":
    key = jax.random.PRNGKey(0)
    kx, kw, kb = jax.random.split(key, 3)

    B = 8  # small batch

    # Deterministic parameter init (mimic nn.Linear uniform(-1/sqrt(fan_in), ...))
    bound = 1.0 / jnp.sqrt(jnp.float32(D))
    w_stacked = jax.random.uniform(kw, (L, D, D), jnp.float32, -bound, bound)
    b_stacked = jax.random.uniform(kb, (L, D), jnp.float32, -bound, bound)

    # The module's forward takes a list of L inputs; stack them as (L, B, D).
    x_stacked = jax.random.normal(kx, (L, B, D), dtype=jnp.float32)

    out = bmm_fusion_forward(x_stacked, w_stacked, b_stacked)
    out = jax.block_until_ready(out)

    # Pure-JAX reference: sum_l (x[l] @ W[l].T + b[l])
    ref = jnp.einsum("lbi,loi->bo", x_stacked, w_stacked) + b_stacked.sum(0)[None, :]
    assert out.shape == (B, D)
    assert jnp.allclose(out, ref, atol=1e-4, rtol=1e-4)

    print("KERNEL_OK")
</pallas_src>

<mosaic_0001>
module attributes {stable_mosaic.version = 11 : i64} {
  func.func @_fused_bmm_sum_kernel(%arg0: memref<8x128xf32, #tpu.memory_space<vmem>>, %arg1: memref<128x10xf32, #tpu.memory_space<vmem>>, %arg2: memref<1x10xf32, #tpu.memory_space<vmem>>, %arg3: memref<8x10xf32, #tpu.memory_space<vmem>>) attributes {dimension_semantics = [], scalar_prefetch = 0 : i64, scratch_operands = 0 : i64, tpu.core_type = #tpu.core_type<tc>} {
    %c0 = arith.constant 0 : index
    %c0_0 = arith.constant 0 : index
    %0 = vector.load %arg0[%c0, %c0_0] : memref<8x128xf32, #tpu.memory_space<vmem>>, vector<8x128xf32>
    %c0_1 = arith.constant 0 : index
    %c0_2 = arith.constant 0 : index
    %1 = vector.load %arg1[%c0_1, %c0_2] : memref<128x10xf32, #tpu.memory_space<vmem>>, vector<128x10xf32>
    %cst = arith.constant dense<0.000000e+00> : vector<8x10xf32>
    %2 = tpu.matmul %0, %1, %cst {dimension_numbers = #tpu.dot_dimension_numbers<[1], [0], [0], [1], [0, 0, 1, 1], [], []>} : vector<8x128xf32>, vector<128x10xf32>, vector<8x10xf32> -> vector<8x10xf32>
    %c0_3 = arith.constant 0 : index
    %c0_4 = arith.constant 0 : index
    %3 = vector.load %arg2[%c0_3, %c0_4] : memref<1x10xf32, #tpu.memory_space<vmem>>, vector<1x10xf32>
    %4 = vector.broadcast %3 : vector<1x10xf32> to vector<8x10xf32>
    %5 = arith.addf %2, %4 : vector<8x10xf32>
    %c0_5 = arith.constant 0 : index
    %c0_6 = arith.constant 0 : index
    %6 = vector.load %arg3[%c0_5, %c0_6] : memref<8x10xf32, #tpu.memory_space<vmem>>, vector<8x10xf32>
    tpu.vector_store %arg3[%c0_5, %c0_6], %5 {strides = array<i32>} : memref<8x10xf32, #tpu.memory_space<vmem>>, vector<8x10xf32>,
    return
  }
}

</mosaic_0001>

<llo_original>
// kernel: tpu_custom_call.1
$region0: #{tpu_custom_call.1}
  #allocation0 [shape = 'u32[]', space=smem, size = 0x4, offset = 0x4, fixed_abs, tag = 'smem constant byte address 0x4 - core index']
  #allocation1 [shape = 'u32[144,128]{1,0:T(1,128)}', space=vmem, size = 0x12000, scoped, tag = 'internal scratch']
  %s0 = inlined_call_operand.vmem [shape: f32[8,128], index: 0, kind: input, shape index: {}]
  %s1 = inlined_call_operand.vmem [shape: f32[128,10], index: 1, kind: input, shape index: {}]
  %s2 = inlined_call_operand.vmem [shape: f32[1,10], index: 2, kind: input, shape index: {}]
  %s3 = inlined_call_operand.hbm [shape: f32[8,10], index: 3, kind: output, shape index: {}]
  %s4 = sld [smem:[#allocation0]]
  $region22: #{tpu_custom_call.1} parent=0
    _
  %s6 = ssub.s32 1, %s4
  %s7 = scalar_select 0, %s6, %s4
  $region1: #{tpu_custom_call.1} parent=0
    #allocation2 [shape = 'u8[4096]{0}', space=vmem, size = 0x1000, scoped, tag = 'output window, operand 0, single buffered']
    #allocation3 [shape = 's32[1]{0}', space=sflag, size = 0x4, scoped, tag = 'scoped memory for tpu_custom_call.1']
    %8 = vsyncpa [#allocation3], 0
    // Predicated region
    $region2: #{tpu_custom_call.1} parent=1 // pred_check
      _
    $region3: #{tpu_custom_call.1} parent=1 // pred_check_branch
      %10 = sbr.rel (0) target = $region5
    $region4: #{tpu_custom_call.1} parent=1 // pred_region
      _
    $region5: #{tpu_custom_call.1} parent=1 // pred_fallthru
      _
    // Predicated region
    $region6: #{tpu_custom_call.1} parent=1 // pred_check
      _
    $region7: #{tpu_custom_call.1} parent=1 // pred_check_branch
      %12 = sbr.rel (0) target = $region9
    $region8: #{tpu_custom_call.1} parent=1 // pred_region
      _
    $region9: #{tpu_custom_call.1} parent=1 // pred_fallthru
      _
    // Predicated region
    $region10: #{tpu_custom_call.1} parent=1 // pred_check
      _
    $region11: #{tpu_custom_call.1} parent=1 // pred_check_branch
      %14 = sbr.rel (0) target = $region13
    $region12: #{tpu_custom_call.1} parent=1 // pred_region
      _
    $region13: #{tpu_custom_call.1} parent=1 // pred_fallthru
      _
    %v15 = vld [vmem:[%s0] sm:$0xff]
    %v16 = vld [vmem:[%s1] sm:$0xff]
    %v17 = vld [vmem:[%s1 + $0x8] sm:$0xff]
    %v18 = vld [vmem:[%s1 + $0x10] sm:$0xff]
    %v19 = vld [vmem:[%s1 + $0x18] sm:$0xff]
    %v20 = vld [vmem:[%s1 + $0x20] sm:$0xff]
    %v21 = vld [vmem:[%s1 + $0x28] sm:$0xff]
    %v22 = vld [vmem:[%s1 + $0x30] sm:$0xff]
    %v23 = vld [vmem:[%s1 + $0x38] sm:$0xff]
    %v24 = vld [vmem:[%s1 + $0x40] sm:$0xff]
    %v25 = vld [vmem:[%s1 + $0x48] sm:$0xff]
    %v26 = vld [vmem:[%s1 + $0x50] sm:$0xff]
    %v27 = vld [vmem:[%s1 + $0x58] sm:$0xff]
    %v28 = vld [vmem:[%s1 + $0x60] sm:$0xff]
    %v29 = vld [vmem:[%s1 + $0x68] sm:$0xff]
    %v30 = vld [vmem:[%s1 + $0x70] sm:$0xff]
    %v31 = vld [vmem:[%s1 + $0x78] sm:$0xff]
    %v32 = vld [vmem:[%s2] sm:$0x1]
    %v34 = vlaneseq
    %v35 = vshrl.u32 %v34, 7
    %v36 = vsub.s32 0, %v35
    %v37 = vrot.slane %v32, %v36
    %39 = vmatprep.subr.mxu0 0.0
    %40 = vmatpush1.msra.mxu0 %v16
    %41 = vmatprep.subr.mxu0 0.0
    %42 = vmatpush1.msra.mxu0 %v17
    %43 = vmatprep.subr.mxu0 0.0
    %44 = vmatpush1.msra.mxu0 %v18
    %45 = vmatprep.subr.mxu0 0.0
    %46 = vmatpush1.msra.mxu0 %v19
    %47 = vmatprep.subr.mxu0 0.0
    %48 = vmatpush1.msra.mxu0 %v20
    %49 = vmatprep.subr.mxu0 0.0
    %50 = vmatpush1.msra.mxu0 %v21
    %51 = vmatprep.subr.mxu0 0.0
    %52 = vmatpush1.msra.mxu0 %v22
    %53 = vmatprep.subr.mxu0 0.0
    %54 = vmatpush1.msra.mxu0 %v23
    %55 = vmatprep.subr.mxu0 0.0
    %56 = vmatpush1.msra.mxu0 %v24
    %57 = vmatprep.subr.mxu0 0.0
    %58 = vmatpush1.msra.mxu0 %v25
    %59 = vmatprep.subr.mxu0 0.0
    %60 = vmatpush1.msra.mxu0 %v26
    %61 = vmatprep.subr.mxu0 0.0
    %62 = vmatpush1.msra.mxu0 %v27
    %63 = vmatprep.subr.mxu0 0.0
    %64 = vmatpush1.msra.mxu0 %v28
    %65 = vmatprep.subr.mxu0 0.0
    %66 = vmatpush1.msra.mxu0 %v29
    %67 = vmatprep.subr.mxu0 0.0
    %68 = vmatpush1.msra.mxu0 %v30
    %69 = vmatprep.subr.mxu0 0.0
    %70 = vmatpush1.msra.mxu0 %v31
    %71 = vmatprep.subr.mxu0 0.0
    %72 = vmatpush1.msra.mxu0 0.0
    %73 = vmatprep.subr.mxu0 0.0
    %74 = vmatpush1.msra.mxu0 0.0
    %75 = vmatprep.subr.mxu0 0.0
    %76 = vmatpush1.msra.mxu0 0.0
    %77 = vmatprep.subr.mxu0 0.0
    %78 = vmatpush1.msra.mxu0 0.0
    %79 = vmatprep.subr.mxu0 0.0
    %80 = vmatpush1.msra.mxu0 0.0
    %81 = vmatprep.subr.mxu0 0.0
    %82 = vmatpush1.msra.mxu0 0.0
    %83 = vmatprep.subr.mxu0 0.0
    %84 = vmatpush1.msra.mxu0 0.0
    %85 = vmatprep.subr.mxu0 0.0
    %86 = vmatpush1.msra.mxu0 0.0
    %87 = vmatprep.subr.mxu0 0.0
    %88 = vmatpush1.msra.mxu0 0.0
    %89 = vmatprep.subr.mxu0 0.0
    %90 = vmatpush1.msra.mxu0 0.0
    %91 = vmatprep.subr.mxu0 0.0
    %92 = vmatpush1.msra.mxu0 0.0
    %93 = vmatprep.subr.mxu0 0.0
    %94 = vmatpush1.msra.mxu0 0.0
    %95 = vmatprep.subr.mxu0 0.0
    %96 = vmatpush1.msra.mxu0 0.0
    %97 = vmatprep.subr.mxu0 0.0
    %98 = vmatpush1.msra.mxu0 0.0
    %99 = vmatprep.subr.mxu0 0.0
    %100 = vmatpush1.msra.mxu0 0.0
    %101 = vmatprep.subr.mxu0 0.0
    %102 = vmatpush1.msra.mxu0 0.0
    %103 = vmatprep.mubr.f32.mxu0 0.0
    %104 = vmatmul.mubr.f32.gmra.mrb[0].mxu0 %v15
    %v105 = vpop.f32.mrb[0].mxu0
    %v106 = vadd.f32 %v37, %v105
    %v107 = vpop.f32.mrb[0].mxu0
    %108 = vdwg.mxu0
    %vm109 = vcmask 80896
    %110 = vst.msk [vmem:[#allocation2] sm:$0xff] %vm109, %v106
    // Predicated region
    $region14: #{tpu_custom_call.1} parent=1 // pred_check
      _
    $region15: #{tpu_custom_call.1} parent=1 // pred_check_branch
      %112 = sbr.rel (0) target = $region17
    $region16: #{tpu_custom_call.1} parent=1 // pred_region
      %s114 = ssub.s32 128, 128
      %115 = vsyncadd [#allocation3], %s114
      %s117 = sshll.u32 [#allocation2], 4
      %s118 = int_to_ptr.vmem [resolvable:$true] %s117
      %120 = dma.vmem_to_hbm [thread:$0]  %s118, 128, %s3, [#allocation3]
    $region17: #{tpu_custom_call.1} parent=1 // pred_fallthru
      _
    // Predicated region
    $region18: #{tpu_custom_call.1} parent=1 // pred_check
      _
    $region19: #{tpu_custom_call.1} parent=1 // pred_check_branch
      %122 = sbr.rel (0) target = $region21
    $region20: #{tpu_custom_call.1} parent=1 // pred_region
      %123 = dma.done [#allocation3], 128
    $region21: #{tpu_custom_call.1} parent=1 // pred_fallthru
      _
    %124 = vsyncpa [#allocation3], 1

</llo_original>
